<compile_context>
chip_gen: v6e
topology: v6e:2x2x1
jax: 0.10.0
libtpu: 0.0.40
codegen_flags: <defaults>
</compile_context>

<pallas_src>
import jax
import jax.numpy as jnp
from jax.experimental import pallas as pl
from jax.experimental.pallas import tpu as pltpu


def _round_up(x, m):
    return (x + m - 1) // m * m


def _cro_attention_kernel(sc_ref, nv_ref, ev_ref,
                          w_sc_ref, b_sc_ref, w_vn_ref, b_vn_ref,
                          out_ref):
    """One lane-tile of TR rows (nodes/edges); rows on lanes, channels on sublanes.

    Layouts:
      sc   : [hid_sca + out_sca, TR]      edge_scalar^T stacked over node_scalar^T
      nv   : [3, out_vec, TR]             node vector features (xyz-major)
      ev   : [3, hid_vec, TR]             edge vector features (xyz-major)
      w_sc : [2*out_vec, hid_sca+out_sca] block-diagonal fused (e2n | n2e) weight^T
      b_sc : [2*out_vec, 1]
      w_vn : [out_vec, hid_vec]           VNLinear weight (torch layout)
      b_vn : [out_vec, 1]
      out  : [3, out_vec, TR]
    """
    out_vec = nv_ref.shape[1]
    scale = jnp.float32(out_vec)

    # Fused scalar-track linears: one MXU pass, operands in stored dtype
    # (bf16 is MXU-native), f32 accumulation.
    att = jnp.dot(w_sc_ref[...], sc_ref[...],
                  preferred_element_type=jnp.float32)
    att = att + b_sc_ref[...].astype(jnp.float32)
    esa = att[:out_vec]               # [out_vec, TR]  e2n_linear(edge_scalar)^T
    eva = att[out_vec:]               # [out_vec, TR]  n2e_linear(node_scalar)^T

    # VNLinear: one shared Linear over channels applied to each xyz slab.
    ev_in = ev_ref[...]
    w_vn = w_vn_ref[...]
    ev = jnp.stack(
        [jnp.dot(w_vn, ev_in[d], preferred_element_type=jnp.float32)
         for d in range(3)], axis=0)                       # [3, out_vec, TR]
    ev = ev + b_vn_ref[...].astype(jnp.float32)[None]

    # f32 only where the elementwise / softmax path actually needs it.
    nv = nv_ref[...].astype(jnp.float32)                   # [3, out_vec, TR]

    def channel_softmax(logits):
        # softmax over the channel axis (sublanes) * out_vec.  Exact division:
        # the approx EUP reciprocal was the source of the previous ~1e-1 error.
        m = jnp.max(logits, axis=1, keepdims=True)
        p = jnp.exp(logits - m)
        denom = jnp.sum(p, axis=1, keepdims=True)
        return p * (scale / denom)

    node_att = channel_softmax(nv * esa[None])              # [3, out_vec, TR]
    edge_att = channel_softmax(ev * eva[None])               # [3, out_vec, TR]

    out_ref[...] = (node_att * nv + edge_att * ev).astype(out_ref.dtype)


def cro_attention(node_scalar, node_vector, edge_scalar, edge_vector,
                  w_e2n, b_e2n, w_n2e, b_n2e, w_vn, b_vn,
                  *, block_cols=2048):
    """Pallas TPU forward of cro_attention.

    node_scalar: [N, out_sca]        node_vector: [N, out_vec, 3]
    edge_scalar: [N, hid_sca]        edge_vector: [N, hid_vec, 3]
    Weights stored transposed vs torch: w_*: [in_features, out_features].
    Returns y_vector: [N, out_vec, 3].
    """
    n, out_sca = node_scalar.shape
    hid_sca = edge_scalar.shape[-1]
    out_vec = node_vector.shape[1]
    hid_vec = edge_vector.shape[1]
    k_sc = hid_sca + out_sca

    # --- layout: put the (wide) row axis N on lanes --------------------------
    # TODO(synk): if the surrounding model carries vector features in [3, C, N]
    # layout end-to-end these wrapper transposes (size-3 minor dim) disappear.
    nv_t = jnp.transpose(node_vector, (2, 1, 0))            # [3, out_vec, N]
    ev_t = jnp.transpose(edge_vector, (2, 1, 0))            # [3, hid_vec, N]
    sc_t = jnp.concatenate([edge_scalar.T, node_scalar.T], axis=0)  # [k_sc, N]

    # Fuse e2n_linear / n2e_linear into one block-diagonal weight (trace time).
    wdt = w_e2n.dtype
    w_sc = jnp.zeros((2 * out_vec, k_sc), wdt)
    w_sc = w_sc.at[:out_vec, :hid_sca].set(w_e2n.T)
    w_sc = w_sc.at[out_vec:, hid_sca:].set(w_n2e.T)
    b_sc = jnp.concatenate([b_e2n, b_n2e]).reshape(2 * out_vec, 1)
    w_vn_t = w_vn.T                                          # [out_vec, hid_vec]
    b_vn_c = b_vn.reshape(out_vec, 1)

    # --- tiling: rows on lanes, tile a multiple of 128 ------------------------
    lane = 128
    n_lanes = _round_up(max(n, 1), lane)
    tr = min(_round_up(block_cols, lane), n_lanes)
    if tr == n_lanes and n_lanes >= 2 * lane:
        # Split so the ("parallel",) grid has >= 2 steps: keeps both v7x TCs busy.
        tr = _round_up(n_lanes // 2, lane)
    steps = -(-n_lanes // tr)
    n_pad = steps * tr
    pad = n_pad - n
    if pad:
        sc_t = jnp.pad(sc_t, ((0, 0), (0, pad)))
        nv_t = jnp.pad(nv_t, ((0, 0), (0, 0), (0, pad)))
        ev_t = jnp.pad(ev_t, ((0, 0), (0, 0), (0, pad)))

    itemsize = jnp.dtype(node_vector.dtype).itemsize
    cost = pl.CostEstimate(
        flops=int(n_pad * (2 * (2 * out_vec) * k_sc
                           + 3 * 2 * out_vec * hid_vec
                           + 30 * out_vec)),
        transcendentals=int(n_pad * 6 * out_vec),
        bytes_accessed=int(itemsize * n_pad * (k_sc + 3 * hid_vec + 6 * out_vec)),
    )

    out = pl.pallas_call(
        _cro_attention_kernel,
        out_shape=jax.ShapeDtypeStruct((3, out_vec, n_pad), node_vector.dtype),
        grid=(steps,),
        in_specs=[
            pl.BlockSpec((k_sc, tr), lambda i: (0, i)),               # scalars
            pl.BlockSpec((3, out_vec, tr), lambda i: (0, 0, i)),      # node_vector
            pl.BlockSpec((3, hid_vec, tr), lambda i: (0, 0, i)),      # edge_vector
            pl.BlockSpec((2 * out_vec, k_sc), lambda i: (0, 0)),      # fused W^T
            pl.BlockSpec((2 * out_vec, 1), lambda i: (0, 0)),         # fused bias
            pl.BlockSpec((out_vec, hid_vec), lambda i: (0, 0)),       # VN weight
            pl.BlockSpec((out_vec, 1), lambda i: (0, 0)),             # VN bias
        ],
        out_specs=pl.BlockSpec((3, out_vec, tr), lambda i: (0, 0, i)),
        compiler_params=pltpu.CompilerParams(
            dimension_semantics=("parallel",),       # row tiles are independent
            vmem_limit_bytes=48 * 1024 * 1024,       # explicit; footprint ~12 MiB
        ),
        cost_estimate=cost,
    )(sc_t, nv_t, ev_t, w_sc, b_sc, w_vn_t, b_vn_c)

    y = out[:, :, :n]                                # drop padded rows (lanes)
    return jnp.transpose(y, (2, 1, 0))               # [N, out_vec, 3]


def _reference(node_scalar, node_vector, edge_scalar, edge_vector,
               w_e2n, b_e2n, w_n2e, b_n2e, w_vn, b_vn):
    out_vec = node_vector.shape[1]
    esa = (edge_scalar @ w_e2n + b_e2n)[..., None]                     # [N, out_vec, 1]
    node_att = jax.nn.softmax(node_vector * esa, axis=1) * out_vec
    eva = (node_scalar @ w_n2e + b_n2e)[..., None]                     # [N, out_vec, 1]
    ev = jnp.einsum("nhd,ho->nod", edge_vector, w_vn) + b_vn[None, :, None]
    edge_att = jax.nn.softmax(ev * eva, axis=1) * out_vec
    return node_att * node_vector + edge_att * ev


if __name__ == "__main__":
    # Small shapes consistent with the module; N deliberately not a multiple of
    # 8/128 to exercise the lane padding path.
    N = 37
    hid_sca, hid_vec, out_sca, out_vec = 32, 16, 24, 40

    key = jax.random.PRNGKey(0)
    keys = jax.random.split(key, 10)

    node_scalar = jax.random.normal(keys[0], (N, out_sca), jnp.float32)
    node_vector = jax.random.normal(keys[1], (N, out_vec, 3), jnp.float32)
    edge_scalar = jax.random.normal(keys[2], (N, hid_sca), jnp.float32)
    edge_vector = jax.random.normal(keys[3], (N, hid_vec, 3), jnp.float32)

    def linear_params(kw, kb, fan_in, fan_out):
        # torch default Linear init (uniform +/- 1/sqrt(fan_in)); weight stored
        # transposed as [fan_in, fan_out].
        bound = 1.0 / (fan_in ** 0.5)
        w = jax.random.uniform(kw, (fan_in, fan_out), jnp.float32, -bound, bound)
        b = jax.random.uniform(kb, (fan_out,), jnp.float32, -bound, bound)
        return w, b

    w_e2n, b_e2n = linear_params(keys[4], keys[5], hid_sca, out_vec)
    w_n2e, b_n2e = linear_params(keys[6], keys[7], out_sca, out_vec)
    w_vn, b_vn = linear_params(keys[8], keys[9], hid_vec, out_vec)

    out = cro_attention(node_scalar, node_vector, edge_scalar, edge_vector,
                        w_e2n, b_e2n, w_n2e, b_n2e, w_vn, b_vn)
    out = jax.block_until_ready(out)

    ref = _reference(node_scalar, node_vector, edge_scalar, edge_vector,
                     w_e2n, b_e2n, w_n2e, b_n2e, w_vn, b_vn)

    assert out.shape == (N, out_vec, 3)
    # Softmax division is exact now; tolerance covers MXU rounding only.
    err = float(jnp.max(jnp.abs(out - ref)))
    assert jnp.allclose(out, ref, atol=5e-3, rtol=5e-3), err

    print("KERNEL_OK")
</pallas_src>

<mosaic_0001>
module attributes {stable_mosaic.version = 11 : i64} {
  func.func @_cro_attention_kernel(%arg0: i32, %arg1: memref<56x128xf32, #tpu.memory_space<vmem>>, %arg2: memref<3x40x128xf32, #tpu.memory_space<vmem>>, %arg3: memref<3x16x128xf32, #tpu.memory_space<vmem>>, %arg4: memref<80x56xf32, #tpu.memory_space<vmem>>, %arg5: memref<80x1xf32, #tpu.memory_space<vmem>>, %arg6: memref<40x16xf32, #tpu.memory_space<vmem>>, %arg7: memref<40x1xf32, #tpu.memory_space<vmem>>, %arg8: memref<3x40x128xf32, #tpu.memory_space<vmem>>) attributes {dimension_semantics = [#tpu.dimension_semantics<parallel>], iteration_bounds = array<i64: 1>, scalar_prefetch = 0 : i64, scratch_operands = 0 : i64, tpu.core_type = #tpu.core_type<tc>, window_params = [{transform_indices = @transform_0, window_bounds = array<i64: 56, 128>}, {transform_indices = @transform_1, window_bounds = array<i64: 3, 40, 128>}, {transform_indices = @transform_2, window_bounds = array<i64: 3, 16, 128>}, {pipeline_mode = #tpu.pipeline_mode<synchronous>, transform_indices = @transform_3, window_bounds = array<i64: 80, 56>}, {pipeline_mode = #tpu.pipeline_mode<synchronous>, transform_indices = @transform_4, window_bounds = array<i64: 80, 1>}, {pipeline_mode = #tpu.pipeline_mode<synchronous>, transform_indices = @transform_5, window_bounds = array<i64: 40, 16>}, {pipeline_mode = #tpu.pipeline_mode<synchronous>, transform_indices = @transform_6, window_bounds = array<i64: 40, 1>}, {transform_indices = @transform_7, window_bounds = array<i64: 3, 40, 128>}]} {
    %c0 = arith.constant 0 : index
    %c0_0 = arith.constant 0 : index
    %0 = vector.load %arg4[%c0, %c0_0] : memref<80x56xf32, #tpu.memory_space<vmem>>, vector<80x56xf32>
    %c0_1 = arith.constant 0 : index
    %c0_2 = arith.constant 0 : index
    %1 = vector.load %arg1[%c0_1, %c0_2] : memref<56x128xf32, #tpu.memory_space<vmem>>, vector<56x128xf32>
    %cst = arith.constant dense<0.000000e+00> : vector<80x128xf32>
    %2 = tpu.matmul %0, %1, %cst {dimension_numbers = #tpu.dot_dimension_numbers<[1], [0], [0], [1], [0, 0, 1, 1], [], []>} : vector<80x56xf32>, vector<56x128xf32>, vector<80x128xf32> -> vector<80x128xf32>
    %c0_3 = arith.constant 0 : index
    %c0_4 = arith.constant 0 : index
    %3 = vector.load %arg5[%c0_3, %c0_4] : memref<80x1xf32, #tpu.memory_space<vmem>>, vector<80x1xf32>
    %4 = vector.broadcast %3 : vector<80x1xf32> to vector<80x128xf32>
    %5 = arith.addf %2, %4 : vector<80x128xf32>
    %6 = vector.extract_strided_slice %5 {offsets = [0, 0], sizes = [40, 128], strides = [1, 1]} : vector<80x128xf32> to vector<40x128xf32>
    %7 = vector.extract_strided_slice %5 {offsets = [40, 0], sizes = [40, 128], strides = [1, 1]} : vector<80x128xf32> to vector<40x128xf32>
    %c0_5 = arith.constant 0 : index
    %c0_6 = arith.constant 0 : index
    %c0_7 = arith.constant 0 : index
    %8 = vector.load %arg3[%c0_5, %c0_6, %c0_7] : memref<3x16x128xf32, #tpu.memory_space<vmem>>, vector<3x16x128xf32>
    %c0_8 = arith.constant 0 : index
    %c0_9 = arith.constant 0 : index
    %9 = vector.load %arg6[%c0_8, %c0_9] : memref<40x16xf32, #tpu.memory_space<vmem>>, vector<40x16xf32>
    %10 = vector.extract_strided_slice %8 {offsets = [0, 0, 0], sizes = [1, 16, 128], strides = [1, 1, 1]} : vector<3x16x128xf32> to vector<1x16x128xf32>
    %11 = vector.shape_cast %10 : vector<1x16x128xf32> to vector<16x128xf32>
    %cst_10 = arith.constant dense<0.000000e+00> : vector<40x128xf32>
    %12 = tpu.matmul %9, %11, %cst_10 {dimension_numbers = #tpu.dot_dimension_numbers<[1], [0], [0], [1], [0, 0, 1, 1], [], []>} : vector<40x16xf32>, vector<16x128xf32>, vector<40x128xf32> -> vector<40x128xf32>
    %13 = vector.extract_strided_slice %8 {offsets = [1, 0, 0], sizes = [1, 16, 128], strides = [1, 1, 1]} : vector<3x16x128xf32> to vector<1x16x128xf32>
    %14 = vector.shape_cast %13 : vector<1x16x128xf32> to vector<16x128xf32>
    %cst_11 = arith.constant dense<0.000000e+00> : vector<40x128xf32>
    %15 = tpu.matmul %9, %14, %cst_11 {dimension_numbers = #tpu.dot_dimension_numbers<[1], [0], [0], [1], [0, 0, 1, 1], [], []>} : vector<40x16xf32>, vector<16x128xf32>, vector<40x128xf32> -> vector<40x128xf32>
    %16 = vector.extract_strided_slice %8 {offsets = [2, 0, 0], sizes = [1, 16, 128], strides = [1, 1, 1]} : vector<3x16x128xf32> to vector<1x16x128xf32>
    %17 = vector.shape_cast %16 : vector<1x16x128xf32> to vector<16x128xf32>
    %cst_12 = arith.constant dense<0.000000e+00> : vector<40x128xf32>
    %18 = tpu.matmul %9, %17, %cst_12 {dimension_numbers = #tpu.dot_dimension_numbers<[1], [0], [0], [1], [0, 0, 1, 1], [], []>} : vector<40x16xf32>, vector<16x128xf32>, vector<40x128xf32> -> vector<40x128xf32>
    %19 = vector.shape_cast %12 : vector<40x128xf32> to vector<1x40x128xf32>
    %20 = vector.shape_cast %15 : vector<40x128xf32> to vector<1x40x128xf32>
    %21 = vector.shape_cast %18 : vector<40x128xf32> to vector<1x40x128xf32>
    %22 = tpu.concatenate %19, %20, %21 in 0 : vector<1x40x128xf32>, vector<1x40x128xf32>, vector<1x40x128xf32> -> vector<3x40x128xf32>
    %c0_13 = arith.constant 0 : index
    %c0_14 = arith.constant 0 : index
    %23 = vector.load %arg7[%c0_13, %c0_14] : memref<40x1xf32, #tpu.memory_space<vmem>>, vector<40x1xf32>
    %24 = vector.shape_cast %23 : vector<40x1xf32> to vector<1x40x1xf32>
    %25 = vector.broadcast %24 : vector<1x40x1xf32> to vector<3x40x128xf32>
    %26 = arith.addf %22, %25 : vector<3x40x128xf32>
    %c0_15 = arith.constant 0 : index
    %c0_16 = arith.constant 0 : index
    %c0_17 = arith.constant 0 : index
    %27 = vector.load %arg2[%c0_15, %c0_16, %c0_17] : memref<3x40x128xf32, #tpu.memory_space<vmem>>, vector<3x40x128xf32>
    %28 = vector.shape_cast %6 : vector<40x128xf32> to vector<1x40x128xf32>
    %29 = vector.broadcast %28 : vector<1x40x128xf32> to vector<3x40x128xf32>
    %30 = arith.mulf %27, %29 : vector<3x40x128xf32>
    %cst_18 = arith.constant dense<0xFF800000> : vector<3x128xf32>
    %31 = vector.multi_reduction <maximumf>, %30, %cst_18 [1] : vector<3x40x128xf32> to vector<3x128xf32>
    %32 = vector.shape_cast %31 : vector<3x128xf32> to vector<3x1x128xf32>
    %33 = vector.broadcast %32 : vector<3x1x128xf32> to vector<3x40x128xf32>
    %34 = arith.subf %30, %33 : vector<3x40x128xf32>
    %35 = math.exp %34 : vector<3x40x128xf32>
    %cst_19 = arith.constant dense<0.000000e+00> : vector<3x128xf32>
    %36 = vector.multi_reduction <add>, %35, %cst_19 [1] : vector<3x40x128xf32> to vector<3x128xf32>
    %37 = vector.shape_cast %36 : vector<3x128xf32> to vector<3x1x128xf32>
    %cst_20 = arith.constant 4.000000e+01 : f32
    %38 = vector.broadcast %cst_20 : f32 to vector<3x1x128xf32>
    %39 = arith.divf %38, %37 : vector<3x1x128xf32>
    %40 = vector.broadcast %39 : vector<3x1x128xf32> to vector<3x40x128xf32>
    %41 = arith.mulf %35, %40 : vector<3x40x128xf32>
    %42 = vector.shape_cast %7 : vector<40x128xf32> to vector<1x40x128xf32>
    %43 = vector.broadcast %42 : vector<1x40x128xf32> to vector<3x40x128xf32>
    %44 = arith.mulf %26, %43 : vector<3x40x128xf32>
    %cst_21 = arith.constant dense<0xFF800000> : vector<3x128xf32>
    %45 = vector.multi_reduction <maximumf>, %44, %cst_21 [1] : vector<3x40x128xf32> to vector<3x128xf32>
    %46 = vector.shape_cast %45 : vector<3x128xf32> to vector<3x1x128xf32>
    %47 = vector.broadcast %46 : vector<3x1x128xf32> to vector<3x40x128xf32>
    %48 = arith.subf %44, %47 : vector<3x40x128xf32>
    %49 = math.exp %48 : vector<3x40x128xf32>
    %cst_22 = arith.constant dense<0.000000e+00> : vector<3x128xf32>
    %50 = vector.multi_reduction <add>, %49, %cst_22 [1] : vector<3x40x128xf32> to vector<3x128xf32>
    %51 = vector.shape_cast %50 : vector<3x128xf32> to vector<3x1x128xf32>
    %cst_23 = arith.constant 4.000000e+01 : f32
    %52 = vector.broadcast %cst_23 : f32 to vector<3x1x128xf32>
    %53 = arith.divf %52, %51 : vector<3x1x128xf32>
    %54 = vector.broadcast %53 : vector<3x1x128xf32> to vector<3x40x128xf32>
    %55 = arith.mulf %49, %54 : vector<3x40x128xf32>
    %56 = arith.mulf %41, %27 : vector<3x40x128xf32>
    %57 = arith.mulf %55, %26 : vector<3x40x128xf32>
    %58 = arith.addf %56, %57 : vector<3x40x128xf32>
    %c0_24 = arith.constant 0 : index
    %c0_25 = arith.constant 0 : index
    %c0_26 = arith.constant 0 : index
    %59 = vector.load %arg8[%c0_24, %c0_25, %c0_26] : memref<3x40x128xf32, #tpu.memory_space<vmem>>, vector<3x40x128xf32>
    tpu.vector_store %arg8[%c0_24, %c0_25, %c0_26], %58 {strides = array<i32>} : memref<3x40x128xf32, #tpu.memory_space<vmem>>, vector<3x40x128xf32>,
    return
  }
  func.func @transform_0(%arg0: i32) -> (i32, i32) {
    %c0_i32 = arith.constant 0 : i32
    %c0_i32_0 = arith.constant 0 : i32
    return %c0_i32, %arg0 : i32, i32
  }
  func.func @transform_1(%arg0: i32) -> (i32, i32, i32) {
    %c0_i32 = arith.constant 0 : i32
    %c0_i32_0 = arith.constant 0 : i32
    %c0_i32_1 = arith.constant 0 : i32
    return %c0_i32, %c0_i32_0, %arg0 : i32, i32, i32
  }
  func.func @transform_2(%arg0: i32) -> (i32, i32, i32) {
    %c0_i32 = arith.constant 0 : i32
    %c0_i32_0 = arith.constant 0 : i32
    %c0_i32_1 = arith.constant 0 : i32
    return %c0_i32, %c0_i32_0, %arg0 : i32, i32, i32
  }
  func.func @transform_3(%arg0: i32) -> (i32, i32) {
    %c0_i32 = arith.constant 0 : i32
    %c0_i32_0 = arith.constant 0 : i32
    %c0_i32_1 = arith.constant 0 : i32
    return %c0_i32, %c0_i32_0 : i32, i32
  }
  func.func @transform_4(%arg0: i32) -> (i32, i32) {
    %c0_i32 = arith.constant 0 : i32
    %c0_i32_0 = arith.constant 0 : i32
    %c0_i32_1 = arith.constant 0 : i32
    return %c0_i32, %c0_i32_0 : i32, i32
  }
  func.func @transform_5(%arg0: i32) -> (i32, i32) {
    %c0_i32 = arith.constant 0 : i32
    %c0_i32_0 = arith.constant 0 : i32
    %c0_i32_1 = arith.constant 0 : i32
    return %c0_i32, %c0_i32_0 : i32, i32
  }
  func.func @transform_6(%arg0: i32) -> (i32, i32) {
    %c0_i32 = arith.constant 0 : i32
    %c0_i32_0 = arith.constant 0 : i32
    %c0_i32_1 = arith.constant 0 : i32
    return %c0_i32, %c0_i32_0 : i32, i32
  }
  func.func @transform_7(%arg0: i32) -> (i32, i32, i32) {
    %c0_i32 = arith.constant 0 : i32
    %c0_i32_0 = arith.constant 0 : i32
    %c0_i32_1 = arith.constant 0 : i32
    return %c0_i32, %c0_i32_0, %arg0 : i32, i32, i32
  }
}

</mosaic_0001>

<llo_original>
// kernel: tpu_custom_call.1
$region0: #{tpu_custom_call.1}
  #allocation0 [shape = 'u32[]', space=smem, size = 0x4, offset = 0x4, fixed_abs, tag = 'smem constant byte address 0x4 - core index']
  #allocation1 [shape = 'u32[144,128]{1,0:T(1,128)}', space=vmem, size = 0x12000, scoped, tag = 'internal scratch']
  %s0 = inlined_call_operand.vmem [shape: f32[56,128], index: 0, kind: input, shape index: {}]
  %s1 = inlined_call_operand.vmem [shape: f32[3,40,128], index: 1, kind: input, shape index: {}]
  %s2 = inlined_call_operand.vmem [shape: f32[3,16,128], index: 2, kind: input, shape index: {}]
  %s3 = inlined_call_operand.vmem [shape: f32[80,56], index: 3, kind: input, shape index: {}]
  %s4 = inlined_call_operand.vmem [shape: f32[80,1], index: 4, kind: input, shape index: {}]
  %s5 = inlined_call_operand.vmem [shape: f32[40,16], index: 5, kind: input, shape index: {}]
  %s6 = inlined_call_operand.vmem [shape: f32[40,1], index: 6, kind: input, shape index: {}]
  %s7 = inlined_call_operand.hbm [shape: f32[3,40,128], index: 7, kind: output, shape index: {}]
  %s8 = sld [smem:[#allocation0]]
  $region38: #{tpu_custom_call.1} parent=0
    _
  %s10 = ssub.s32 1, %s8
  %s11 = scalar_select 0, %s10, %s8
  $region1: #{tpu_custom_call.1} parent=0
    #allocation2 [shape = 'u8[61440]{0}', space=vmem, size = 0xf000, scoped, tag = 'output window, operand 0, single buffered']
    #allocation3 [shape = 's32[1]{0}', space=sflag, size = 0x4, scoped, tag = 'scoped memory for tpu_custom_call.1']
    %12 = vsyncpa [#allocation3], 0
    // Predicated region
    $region2: #{tpu_custom_call.1} parent=1 // pred_check
      _
    $region3: #{tpu_custom_call.1} parent=1 // pred_check_branch
      %14 = sbr.rel (0) target = $region5
    $region4: #{tpu_custom_call.1} parent=1 // pred_region
      _
    $region5: #{tpu_custom_call.1} parent=1 // pred_fallthru
      _
    // Predicated region
    $region6: #{tpu_custom_call.1} parent=1 // pred_check
      _
    $region7: #{tpu_custom_call.1} parent=1 // pred_check_branch
      %16 = sbr.rel (0) target = $region9
    $region8: #{tpu_custom_call.1} parent=1 // pred_region
      _
    $region9: #{tpu_custom_call.1} parent=1 // pred_fallthru
      _
    // Predicated region
    $region10: #{tpu_custom_call.1} parent=1 // pred_check
      _
    $region11: #{tpu_custom_call.1} parent=1 // pred_check_branch
      %18 = sbr.rel (0) target = $region13
    $region12: #{tpu_custom_call.1} parent=1 // pred_region
      _
    $region13: #{tpu_custom_call.1} parent=1 // pred_fallthru
      _
    // Predicated region
    $region14: #{tpu_custom_call.1} parent=1 // pred_check
      _
    $region15: #{tpu_custom_call.1} parent=1 // pred_check_branch
      %20 = sbr.rel (0) target = $region17
    $region16: #{tpu_custom_call.1} parent=1 // pred_region
      _
    $region17: #{tpu_custom_call.1} parent=1 // pred_fallthru
      _
    // Predicated region
    $region18: #{tpu_custom_call.1} parent=1 // pred_check
      _
    $region19: #{tpu_custom_call.1} parent=1 // pred_check_branch
      %22 = sbr.rel (0) target = $region21
    $region20: #{tpu_custom_call.1} parent=1 // pred_region
      _
    $region21: #{tpu_custom_call.1} parent=1 // pred_fallthru
      _
    // Predicated region
    $region22: #{tpu_custom_call.1} parent=1 // pred_check
      _
    $region23: #{tpu_custom_call.1} parent=1 // pred_check_branch
      %24 = sbr.rel (0) target = $region25
    $region24: #{tpu_custom_call.1} parent=1 // pred_region
      _
    $region25: #{tpu_custom_call.1} parent=1 // pred_fallthru
      _
    // Predicated region
    $region26: #{tpu_custom_call.1} parent=1 // pred_check
      _
    $region27: #{tpu_custom_call.1} parent=1 // pred_check_branch
      %26 = sbr.rel (0) target = $region29
    $region28: #{tpu_custom_call.1} parent=1 // pred_region
      _
    $region29: #{tpu_custom_call.1} parent=1 // pred_fallthru
      _
    %v27 = vld [vmem:[%s3] sm:$0xff]
    %v28 = vld [vmem:[%s3 + $0x8] sm:$0xff]
    %v29 = vld [vmem:[%s3 + $0x10] sm:$0xff]
    %v30 = vld [vmem:[%s3 + $0x18] sm:$0xff]
    %v31 = vld [vmem:[%s3 + $0x20] sm:$0xff]
    %v32 = vld [vmem:[%s3 + $0x28] sm:$0xff]
    %v33 = vld [vmem:[%s3 + $0x30] sm:$0xff]
    %v34 = vld [vmem:[%s3 + $0x38] sm:$0xff]
    %v35 = vld [vmem:[%s3 + $0x40] sm:$0xff]
    %v36 = vld [vmem:[%s3 + $0x48] sm:$0xff]
    %v37 = vld [vmem:[%s0] sm:$0xff]
    %v38 = vld [vmem:[%s0 + $0x8] sm:$0xff]
    %v39 = vld [vmem:[%s0 + $0x10] sm:$0xff]
    %v40 = vld [vmem:[%s0 + $0x18] sm:$0xff]
    %v41 = vld [vmem:[%s0 + $0x20] sm:$0xff]
    %v42 = vld [vmem:[%s0 + $0x28] sm:$0xff]
    %v43 = vld [vmem:[%s0 + $0x30] sm:$0xff]
    %v44 = vld [vmem:[%s4] sm:$0xff]
    %v45 = vld [vmem:[%s4 + $0x8] sm:$0xff]
    %v46 = vld [vmem:[%s4 + $0x10] sm:$0xff]
    %v47 = vld [vmem:[%s4 + $0x18] sm:$0xff]
    %v48 = vld [vmem:[%s4 + $0x20] sm:$0xff]
    %v49 = vld [vmem:[%s4 + $0x28] sm:$0xff]
    %v50 = vld [vmem:[%s4 + $0x30] sm:$0xff]
    %v51 = vld [vmem:[%s4 + $0x38] sm:$0xff]
    %v52 = vld [vmem:[%s4 + $0x40] sm:$0xff]
    %v53 = vld [vmem:[%s4 + $0x48] sm:$0xff]
    %55 = vset.pattern.permute.xlu0 0
    %56 = vperm.xlu0 %55, %v44
    %v57 = vpop.permute.xlu0 %56
    %60 = vset.pattern.permute.xlu0 0
    %61 = vperm.xlu0 %60, %v45
    %v62 = vpop.permute.xlu0 %61
    %65 = vset.pattern.permute.xlu0 0
    %66 = vperm.xlu0 %65, %v46
    %v67 = vpop.permute.xlu0 %66
    %70 = vset.pattern.permute.xlu0 0
    %71 = vperm.xlu0 %70, %v47
    %v72 = vpop.permute.xlu0 %71
    %75 = vset.pattern.permute.xlu0 0
    %76 = vperm.xlu0 %75, %v48
    %v77 = vpop.permute.xlu0 %76
    %80 = vset.pattern.permute.xlu0 0
    %81 = vperm.xlu0 %80, %v49
    %v82 = vpop.permute.xlu0 %81
    %85 = vset.pattern.permute.xlu0 0
    %86 = vperm.xlu0 %85, %v50
    %v87 = vpop.permute.xlu0 %86
    %90 = vset.pattern.permute.xlu0 0
    %91 = vperm.xlu0 %90, %v51
    %v92 = vpop.permute.xlu0 %91
    %95 = vset.pattern.permute.xlu0 0
    %96 = vperm.xlu0 %95, %v52
    %v97 = vpop.permute.xlu0 %96
    %100 = vset.pattern.permute.xlu0 0
    %101 = vperm.xlu0 %100, %v53
    %v102 = vpop.permute.xlu0 %101
    %vm104 = vcmask 457728
    %v106 = vsel %vm104, %v27, 0
    %v109 = vsel %vm104, %v28, 0
    %v112 = vsel %vm104, %v29, 0
    %v115 = vsel %vm104, %v30, 0
    %v118 = vsel %vm104, %v31, 0
    %v121 = vsel %vm104, %v32, 0
    %v124 = vsel %vm104, %v33, 0
    %v127 = vsel %vm104, %v34, 0
    %v130 = vsel %vm104, %v35, 0
    %v133 = vsel %vm104, %v36, 0
    %135 = vmatprep.subr.mxu0 0.0
    %136 = vmatpush1.msra.mxu0 0.0
    %137 = vmatprep.subr.mxu0 0.0
    %138 = vmatpush1.msra.mxu0 0.0
    %139 = vmatprep.subr.mxu0 0.0
    %140 = vmatpush1.msra.mxu0 0.0
    %141 = vmatprep.subr.mxu0 0.0
    %142 = vmatpush1.msra.mxu0 0.0
    %143 = vmatprep.subr.mxu0 0.0
    %144 = vmatpush1.msra.mxu0 0.0
    %145 = vmatprep.subr.mxu0 0.0
    %146 = vmatpush1.msra.mxu0 0.0
    %147 = vmatprep.subr.mxu0 0.0
    %148 = vmatpush1.msra.mxu0 0.0
    %149 = vmatprep.subr.mxu0 0.0
    %150 = vmatpush1.msra.mxu0 0.0
    %151 = vmatprep.subr.mxu0 0.0
    %152 = vmatpush1.msra.mxu0 0.0
    %153 = vmatprep.subr.mxu0 0.0
    %154 = vmatpush1.msra.mxu0 %v43
    %155 = vmatprep.subr.mxu0 0.0
    %156 = vmatpush1.msra.mxu0 %v42
    %157 = vmatprep.subr.mxu0 0.0
    %158 = vmatpush1.msra.mxu0 %v41
    %159 = vmatprep.subr.mxu0 0.0
    %160 = vmatpush1.msra.mxu0 %v40
    %161 = vmatprep.subr.mxu0 0.0
    %162 = vmatpush1.msra.mxu0 %v39
    %163 = vmatprep.subr.mxu0 0.0
    %164 = vmatpush1.msra.mxu0 %v38
    %165 = vmatprep.subr.mxu0 0.0
    %166 = vmatpush1.msra.mxu0 %v37
    %167 = vmatprep.subr.mxu0 0.0
    %168 = vmatpush2.msra.mxu0 0.0
    %169 = vmatprep.subr.mxu0 0.0
    %170 = vmatpush2.msra.mxu0 0.0
    %171 = vmatprep.subr.mxu0 0.0
    %172 = vmatpush2.msra.mxu0 0.0
    %173 = vmatprep.subr.mxu0 0.0
    %174 = vmatpush2.msra.mxu0 0.0
    %175 = vmatprep.subr.mxu0 0.0
    %176 = vmatpush2.msra.mxu0 0.0
    %177 = vmatprep.subr.mxu0 0.0
    %178 = vmatpush2.msra.mxu0 0.0
    %179 = vmatprep.subr.mxu0 0.0
    %180 = vmatpush2.msra.mxu0 0.0
    %181 = vmatprep.subr.mxu0 0.0
    %182 = vmatpush2.msra.mxu0 0.0
    %183 = vmatprep.subr.mxu0 0.0
    %184 = vmatpush2.msra.mxu0 0.0
    %185 = vmatprep.subr.mxu0 0.0
    %186 = vmatpush2.msra.mxu0 0.0
    %187 = vmatprep.subr.mxu0 0.0
    %188 = vmatpush2.msra.mxu0 0.0
    %189 = vmatprep.subr.mxu0 0.0
    %190 = vmatpush2.msra.mxu0 0.0
    %191 = vmatprep.subr.mxu0 0.0
    %192 = vmatpush2.msra.mxu0 0.0
    %193 = vmatprep.subr.mxu0 0.0
    %194 = vmatpush2.msra.mxu0 0.0
    %195 = vmatprep.subr.mxu0 0.0
    %196 = vmatpush2.msra.mxu0 0.0
    %197 = vmatprep.subr.mxu0 0.0
    %198 = vmatpush2.msra.mxu0 0.0
    %199 = vmatprep.mubr.f32.mxu0 0.0
    %200 = vmatmul.mubr.f32.gmra.mxu0 %v106
    %v201 = vpop.f32.mrf.mxu0
    %v202 = vadd.f32 %v57, %v201
    %v203 = vpop.f32.mrf.mxu0
    %204 = vmatprep.mubr.f32.mxu0 0.0
    %205 = vmatmul.mubr.f32.gmra.mxu0 %v109
    %v206 = vpop.f32.mrf.mxu0
    %v207 = vadd.f32 %v62, %v206
    %v208 = vpop.f32.mrf.mxu0
    %209 = vmatprep.mubr.f32.mxu0 0.0
    %210 = vmatmul.mubr.f32.gmra.mxu0 %v112
    %v211 = vpop.f32.mrf.mxu0
    %v212 = vadd.f32 %v67, %v211
    %v213 = vpop.f32.mrf.mxu0
    %214 = vmatprep.mubr.f32.mxu0 0.0
    %215 = vmatmul.mubr.f32.gmra.mxu0 %v115
    %v216 = vpop.f32.mrf.mxu0
    %v217 = vadd.f32 %v72, %v216
    %v218 = vpop.f32.mrf.mxu0
    %219 = vmatprep.mubr.f32.mxu0 0.0
    %220 = vmatmul.mubr.f32.gmra.mxu0 %v118
    %v221 = vpop.f32.mrf.mxu0
    %v222 = vadd.f32 %v77, %v221
    %v223 = vpop.f32.mrf.mxu0
    %224 = vmatprep.mubr.f32.mxu0 0.0
    %225 = vmatmul.mubr.f32.gmra.mxu0 %v121
    %v226 = vpop.f32.mrf.mxu0
    %v227 = vadd.f32 %v82, %v226
    %v228 = vpop.f32.mrf.mxu0
    %229 = vmatprep.mubr.f32.mxu0 0.0
    %230 = vmatmul.mubr.f32.gmra.mxu0 %v124
    %v231 = vpop.f32.mrf.mxu0
    %v232 = vadd.f32 %v87, %v231
    %v233 = vpop.f32.mrf.mxu0
    %234 = vmatprep.mubr.f32.mxu0 0.0
    %235 = vmatmul.mubr.f32.gmra.mxu0 %v127
    %v236 = vpop.f32.mrf.mxu0
    %v237 = vadd.f32 %v92, %v236
    %v238 = vpop.f32.mrf.mxu0
    %239 = vmatprep.mubr.f32.mxu0 0.0
    %240 = vmatmul.mubr.f32.gmra.mxu0 %v130
    %v241 = vpop.f32.mrf.mxu0
    %v242 = vadd.f32 %v97, %v241
    %v243 = vpop.f32.mrf.mxu0
    %244 = vmatprep.mubr.f32.mxu0 0.0
    %245 = vmatmul.mubr.f32.gmra.mxu0 %v133
    %v246 = vpop.f32.mrf.mxu0
    %v247 = vadd.f32 %v102, %v246
    %v248 = vpop.f32.mrf.mxu0
    %249 = vdwg.mxu0
    %v250 = vld [vmem:[%s2] sm:$0xff]
    %v251 = vld [vmem:[%s2 + $0x8] sm:$0xff]
    %v252 = vld [vmem:[%s2 + $0x10] sm:$0xff]
    %v253 = vld [vmem:[%s2 + $0x18] sm:$0xff]
    %v254 = vld [vmem:[%s2 + $0x20] sm:$0xff]
    %v255 = vld [vmem:[%s2 + $0x28] sm:$0xff]
    %v256 = vld [vmem:[%s5] sm:$0xff]
    %v257 = vld [vmem:[%s5 + $0x8] sm:$0xff]
    %v258 = vld [vmem:[%s5 + $0x10] sm:$0xff]
    %v259 = vld [vmem:[%s5 + $0x18] sm:$0xff]
    %v260 = vld [vmem:[%s5 + $0x20] sm:$0xff]
    %vm261 = vcmask 130048
    %v263 = vsel %vm261, %v256, 0
    %v266 = vsel %vm261, %v257, 0
    %v269 = vsel %vm261, %v258, 0
    %v272 = vsel %vm261, %v259, 0
    %v275 = vsel %vm261, %v260, 0
    %277 = vmatprep.subr.mxu0 0.0
    %278 = vmatpush1.msra.mxu0 0.0
    %279 = vmatprep.subr.mxu0 0.0
    %280 = vmatpush1.msra.mxu0 0.0
    %281 = vmatprep.subr.mxu0 0.0
    %282 = vmatpush1.msra.mxu0 0.0
    %283 = vmatprep.subr.mxu0 0.0
    %284 = vmatpush1.msra.mxu0 0.0
    %285 = vmatprep.subr.mxu0 0.0
    %286 = vmatpush1.msra.mxu0 0.0
    %287 = vmatprep.subr.mxu0 0.0
    %288 = vmatpush1.msra.mxu0 0.0
    %289 = vmatprep.subr.mxu0 0.0
    %290 = vmatpush1.msra.mxu0 0.0
    %291 = vmatprep.subr.mxu0 0.0
    %292 = vmatpush1.msra.mxu0 0.0
    %293 = vmatprep.subr.mxu0 0.0
    %294 = vmatpush1.msra.mxu0 0.0
    %295 = vmatprep.subr.mxu0 0.0
    %296 = vmatpush1.msra.mxu0 0.0
    %297 = vmatprep.subr.mxu0 0.0
    %298 = vmatpush1.msra.mxu0 0.0
    %299 = vmatprep.subr.mxu0 0.0
    %300 = vmatpush1.msra.mxu0 0.0
    %301 = vmatprep.subr.mxu0 0.0
    %302 = vmatpush1.msra.mxu0 0.0
    %303 = vmatprep.subr.mxu0 0.0
    %304 = vmatpush1.msra.mxu0 0.0
    %305 = vmatprep.subr.mxu0 0.0
    %306 = vmatpush1.msra.mxu0 %v251
    %307 = vmatprep.subr.mxu0 0.0
    %308 = vmatpush1.msra.mxu0 %v250
    %309 = vmatprep.subr.mxu0 0.0
    %310 = vmatpush2.msra.mxu0 0.0
    %311 = vmatprep.subr.mxu0 0.0
    %312 = vmatpush2.msra.mxu0 0.0
    %313 = vmatprep.subr.mxu0 0.0
    %314 = vmatpush2.msra.mxu0 0.0
    %315 = vmatprep.subr.mxu0 0.0
    %316 = vmatpush2.msra.mxu0 0.0
    %317 = vmatprep.subr.mxu0 0.0
    %318 = vmatpush2.msra.mxu0 0.0
    %319 = vmatprep.subr.mxu0 0.0
    %320 = vmatpush2.msra.mxu0 0.0
    %321 = vmatprep.subr.mxu0 0.0
    %322 = vmatpush2.msra.mxu0 0.0
    %323 = vmatprep.subr.mxu0 0.0
    %324 = vmatpush2.msra.mxu0 0.0
    %325 = vmatprep.subr.mxu0 0.0
    %326 = vmatpush2.msra.mxu0 0.0
    %327 = vmatprep.subr.mxu0 0.0
    %328 = vmatpush2.msra.mxu0 0.0
    %329 = vmatprep.subr.mxu0 0.0
    %330 = vmatpush2.msra.mxu0 0.0
    %331 = vmatprep.subr.mxu0 0.0
    %332 = vmatpush2.msra.mxu0 0.0
    %333 = vmatprep.subr.mxu0 0.0
    %334 = vmatpush2.msra.mxu0 0.0
    %335 = vmatprep.subr.mxu0 0.0
    %336 = vmatpush2.msra.mxu0 0.0
    %337 = vmatprep.subr.mxu0 0.0
    %338 = vmatpush2.msra.mxu0 0.0
    %339 = vmatprep.subr.mxu0 0.0
    %340 = vmatpush2.msra.mxu0 0.0
    %341 = vmatprep.mubr.f32.mxu0 0.0
    %342 = vmatmul.mubr.f32.gmra.mxu0 %v263
    %v343 = vpop.f32.mrf.mxu0
    %v344 = vadd.f32 0.0, %v343
    %v345 = vpop.f32.mrf.mxu0
    %346 = vmatprep.mubr.f32.mxu0 0.0
    %347 = vmatmul.mubr.f32.gmra.mxu0 %v266
    %v348 = vpop.f32.mrf.mxu0
    %v349 = vadd.f32 0.0, %v348
    %v350 = vpop.f32.mrf.mxu0
    %351 = vmatprep.mubr.f32.mxu0 0.0
    %352 = vmatmul.mubr.f32.gmra.mxu0 %v269
    %v353 = vpop.f32.mrf.mxu0
    %v354 = vadd.f32 0.0, %v353
    %v355 = vpop.f32.mrf.mxu0
    %356 = vmatprep.mubr.f32.mxu0 0.0
    %357 = vmatmul.mubr.f32.gmra.mxu0 %v272
    %v358 = vpop.f32.mrf.mxu0
    %v359 = vadd.f32 0.0, %v358
    %v360 = vpop.f32.mrf.mxu0
    %361 = vmatprep.mubr.f32.mxu0 0.0
    %362 = vmatmul.mubr.f32.gmra.mxu0 %v275
    %v363 = vpop.f32.mrf.mxu0
    %v364 = vadd.f32 0.0, %v363
    %v365 = vpop.f32.mrf.mxu0
    %366 = vdwg.mxu0
    %367 = vmatprep.subr.mxu0 0.0
    %368 = vmatpush1.msra.mxu0 0.0
    %369 = vmatprep.subr.mxu0 0.0
    %370 = vmatpush1.msra.mxu0 0.0
    %371 = vmatprep.subr.mxu0 0.0
    %372 = vmatpush1.msra.mxu0 0.0
    %373 = vmatprep.subr.mxu0 0.0
    %374 = vmatpush1.msra.mxu0 0.0
    %375 = vmatprep.subr.mxu0 0.0
    %376 = vmatpush1.msra.mxu0 0.0
    %377 = vmatprep.subr.mxu0 0.0
    %378 = vmatpush1.msra.mxu0 0.0
    %379 = vmatprep.subr.mxu0 0.0
    %380 = vmatpush1.msra.mxu0 0.0
    %381 = vmatprep.subr.mxu0 0.0
    %382 = vmatpush1.msra.mxu0 0.0
    %383 = vmatprep.subr.mxu0 0.0
    %384 = vmatpush1.msra.mxu0 0.0
    %385 = vmatprep.subr.mxu0 0.0
    %386 = vmatpush1.msra.mxu0 0.0
    %387 = vmatprep.subr.mxu0 0.0
    %388 = vmatpush1.msra.mxu0 0.0
    %389 = vmatprep.subr.mxu0 0.0
    %390 = vmatpush1.msra.mxu0 0.0
    %391 = vmatprep.subr.mxu0 0.0
    %392 = vmatpush1.msra.mxu0 0.0
    %393 = vmatprep.subr.mxu0 0.0
    %394 = vmatpush1.msra.mxu0 0.0
    %395 = vmatprep.subr.mxu0 0.0
    %396 = vmatpush1.msra.mxu0 %v253
    %397 = vmatprep.subr.mxu0 0.0
    %398 = vmatpush1.msra.mxu0 %v252
    %399 = vmatprep.subr.mxu0 0.0
    %400 = vmatpush2.msra.mxu0 0.0
    %401 = vmatprep.subr.mxu0 0.0
    %402 = vmatpush2.msra.mxu0 0.0
    %403 = vmatprep.subr.mxu0 0.0
    %404 = vmatpush2.msra.mxu0 0.0
    %405 = vmatprep.subr.mxu0 0.0
    %406 = vmatpush2.msra.mxu0 0.0
    %407 = vmatprep.subr.mxu0 0.0
    %408 = vmatpush2.msra.mxu0 0.0
    %409 = vmatprep.subr.mxu0 0.0
    %410 = vmatpush2.msra.mxu0 0.0
    %411 = vmatprep.subr.mxu0 0.0
    %412 = vmatpush2.msra.mxu0 0.0
    %413 = vmatprep.subr.mxu0 0.0
    %414 = vmatpush2.msra.mxu0 0.0
    %415 = vmatprep.subr.mxu0 0.0
    %416 = vmatpush2.msra.mxu0 0.0
    %417 = vmatprep.subr.mxu0 0.0
    %418 = vmatpush2.msra.mxu0 0.0
    %419 = vmatprep.subr.mxu0 0.0
    %420 = vmatpush2.msra.mxu0 0.0
    %421 = vmatprep.subr.mxu0 0.0
    %422 = vmatpush2.msra.mxu0 0.0
    %423 = vmatprep.subr.mxu0 0.0
    %424 = vmatpush2.msra.mxu0 0.0
    %425 = vmatprep.subr.mxu0 0.0
    %426 = vmatpush2.msra.mxu0 0.0
    %427 = vmatprep.subr.mxu0 0.0
    %428 = vmatpush2.msra.mxu0 0.0
    %429 = vmatprep.subr.mxu0 0.0
    %430 = vmatpush2.msra.mxu0 0.0
    %431 = vmatprep.mubr.f32.mxu0 0.0
    %432 = vmatmul.mubr.f32.gmra.mxu0 %v263
    %v433 = vpop.f32.mrf.mxu0
    %v434 = vadd.f32 0.0, %v433
    %v435 = vpop.f32.mrf.mxu0
    %436 = vmatprep.mubr.f32.mxu0 0.0
    %437 = vmatmul.mubr.f32.gmra.mxu0 %v266
    %v438 = vpop.f32.mrf.mxu0
    %v439 = vadd.f32 0.0, %v438
    %v440 = vpop.f32.mrf.mxu0
    %441 = vmatprep.mubr.f32.mxu0 0.0
    %442 = vmatmul.mubr.f32.gmra.mxu0 %v269
    %v443 = vpop.f32.mrf.mxu0
    %v444 = vadd.f32 0.0, %v443
    %v445 = vpop.f32.mrf.mxu0
    %446 = vmatprep.mubr.f32.mxu0 0.0
    %447 = vmatmul.mubr.f32.gmra.mxu0 %v272
    %v448 = vpop.f32.mrf.mxu0
    %v449 = vadd.f32 0.0, %v448
    %v450 = vpop.f32.mrf.mxu0
    %451 = vmatprep.mubr.f32.mxu0 0.0
    %452 = vmatmul.mubr.f32.gmra.mxu0 %v275
    %v453 = vpop.f32.mrf.mxu0
    %v454 = vadd.f32 0.0, %v453
    %v455 = vpop.f32.mrf.mxu0
    %456 = vdwg.mxu0
    %457 = vmatprep.subr.mxu0 0.0
    %458 = vmatpush1.msra.mxu0 0.0
    %459 = vmatprep.subr.mxu0 0.0
    %460 = vmatpush1.msra.mxu0 0.0
    %461 = vmatprep.subr.mxu0 0.0
    %462 = vmatpush1.msra.mxu0 0.0
    %463 = vmatprep.subr.mxu0 0.0
    %464 = vmatpush1.msra.mxu0 0.0
    %465 = vmatprep.subr.mxu0 0.0
    %466 = vmatpush1.msra.mxu0 0.0
    %467 = vmatprep.subr.mxu0 0.0
    %468 = vmatpush1.msra.mxu0 0.0
    %469 = vmatprep.subr.mxu0 0.0
    %470 = vmatpush1.msra.mxu0 0.0
    %471 = vmatprep.subr.mxu0 0.0
    %472 = vmatpush1.msra.mxu0 0.0
    %473 = vmatprep.subr.mxu0 0.0
    %474 = vmatpush1.msra.mxu0 0.0
    %475 = vmatprep.subr.mxu0 0.0
    %476 = vmatpush1.msra.mxu0 0.0
    %477 = vmatprep.subr.mxu0 0.0
    %478 = vmatpush1.msra.mxu0 0.0
    %479 = vmatprep.subr.mxu0 0.0
    %480 = vmatpush1.msra.mxu0 0.0
    %481 = vmatprep.subr.mxu0 0.0
    %482 = vmatpush1.msra.mxu0 0.0
    %483 = vmatprep.subr.mxu0 0.0
    %484 = vmatpush1.msra.mxu0 0.0
    %485 = vmatprep.subr.mxu0 0.0
    %486 = vmatpush1.msra.mxu0 %v255
    %487 = vmatprep.subr.mxu0 0.0
    %488 = vmatpush1.msra.mxu0 %v254
    %489 = vmatprep.subr.mxu0 0.0
    %490 = vmatpush2.msra.mxu0 0.0
    %491 = vmatprep.subr.mxu0 0.0
    %492 = vmatpush2.msra.mxu0 0.0
    %493 = vmatprep.subr.mxu0 0.0
    %494 = vmatpush2.msra.mxu0 0.0
    %495 = vmatprep.subr.mxu0 0.0
    %496 = vmatpush2.msra.mxu0 0.0
    %497 = vmatprep.subr.mxu0 0.0
    %498 = vmatpush2.msra.mxu0 0.0
    %499 = vmatprep.subr.mxu0 0.0
    %500 = vmatpush2.msra.mxu0 0.0
    %501 = vmatprep.subr.mxu0 0.0
    %502 = vmatpush2.msra.mxu0 0.0
    %503 = vmatprep.subr.mxu0 0.0
    %504 = vmatpush2.msra.mxu0 0.0
    %505 = vmatprep.subr.mxu0 0.0
    %506 = vmatpush2.msra.mxu0 0.0
    %507 = vmatprep.subr.mxu0 0.0
    %508 = vmatpush2.msra.mxu0 0.0
    %509 = vmatprep.subr.mxu0 0.0
    %510 = vmatpush2.msra.mxu0 0.0
    %511 = vmatprep.subr.mxu0 0.0
    %512 = vmatpush2.msra.mxu0 0.0
    %513 = vmatprep.subr.mxu0 0.0
    %514 = vmatpush2.msra.mxu0 0.0
    %515 = vmatprep.subr.mxu0 0.0
    %516 = vmatpush2.msra.mxu0 0.0
    %517 = vmatprep.subr.mxu0 0.0
    %518 = vmatpush2.msra.mxu0 0.0
    %519 = vmatprep.subr.mxu0 0.0
    %520 = vmatpush2.msra.mxu0 0.0
    %521 = vmatprep.mubr.f32.mxu0 0.0
    %522 = vmatmul.mubr.f32.gmra.mxu0 %v263
    %v523 = vpop.f32.mrf.mxu0
    %v524 = vadd.f32 0.0, %v523
    %v525 = vpop.f32.mrf.mxu0
    %526 = vmatprep.mubr.f32.mxu0 0.0
    %527 = vmatmul.mubr.f32.gmra.mxu0 %v266
    %v528 = vpop.f32.mrf.mxu0
    %v529 = vadd.f32 0.0, %v528
    %v530 = vpop.f32.mrf.mxu0
    %531 = vmatprep.mubr.f32.mxu0 0.0
    %532 = vmatmul.mubr.f32.gmra.mxu0 %v269
    %v533 = vpop.f32.mrf.mxu0
    %v534 = vadd.f32 0.0, %v533
    %v535 = vpop.f32.mrf.mxu0
    %536 = vmatprep.mubr.f32.mxu0 0.0
    %537 = vmatmul.mubr.f32.gmra.mxu0 %v272
    %v538 = vpop.f32.mrf.mxu0
    %v539 = vadd.f32 0.0, %v538
    %v540 = vpop.f32.mrf.mxu0
    %541 = vmatprep.mubr.f32.mxu0 0.0
    %542 = vmatmul.mubr.f32.gmra.mxu0 %v275
    %v543 = vpop.f32.mrf.mxu0
    %v544 = vadd.f32 0.0, %v543
    %v545 = vpop.f32.mrf.mxu0
    %546 = vdwg.mxu0
    %v547 = vld [vmem:[%s6] sm:$0xff]
    %v548 = vld [vmem:[%s6 + $0x8] sm:$0xff]
    %v549 = vld [vmem:[%s6 + $0x10] sm:$0xff]
    %v550 = vld [vmem:[%s6 + $0x18] sm:$0xff]
    %v551 = vld [vmem:[%s6 + $0x20] sm:$0xff]
    %553 = vset.pattern.permute.xlu0 0
    %554 = vperm.xlu0 %553, %v547
    %v555 = vpop.permute.xlu0 %554
    %558 = vset.pattern.permute.xlu0 0
    %559 = vperm.xlu0 %558, %v548
    %v560 = vpop.permute.xlu0 %559
    %563 = vset.pattern.permute.xlu0 0
    %564 = vperm.xlu0 %563, %v549
    %v565 = vpop.permute.xlu0 %564
    %568 = vset.pattern.permute.xlu0 0
    %569 = vperm.xlu0 %568, %v550
    %v570 = vpop.permute.xlu0 %569
    %573 = vset.pattern.permute.xlu0 0
    %574 = vperm.xlu0 %573, %v551
    %v575 = vpop.permute.xlu0 %574
    %v577 = vadd.f32 %v344, %v555
    %v578 = vadd.f32 %v349, %v560
    %v579 = vadd.f32 %v354, %v565
    %v580 = vadd.f32 %v359, %v570
    %v581 = vadd.f32 %v364, %v575
    %v582 = vadd.f32 %v434, %v555
    %v583 = vadd.f32 %v439, %v560
    %v584 = vadd.f32 %v444, %v565
    %v585 = vadd.f32 %v449, %v570
    %v586 = vadd.f32 %v454, %v575
    %v587 = vadd.f32 %v524, %v555
    %v588 = vadd.f32 %v529, %v560
    %v589 = vadd.f32 %v534, %v565
    %v590 = vadd.f32 %v539, %v570
    %v591 = vadd.f32 %v544, %v575
    %v592 = vld [vmem:[%s1] sm:$0xff]
    %v593 = vld [vmem:[%s1 + $0x8] sm:$0xff]
    %v594 = vld [vmem:[%s1 + $0x10] sm:$0xff]
    %v595 = vld [vmem:[%s1 + $0x18] sm:$0xff]
    %v596 = vld [vmem:[%s1 + $0x20] sm:$0xff]
    %v597 = vld [vmem:[%s1 + $0x28] sm:$0xff]
    %v598 = vld [vmem:[%s1 + $0x30] sm:$0xff]
    %v599 = vld [vmem:[%s1 + $0x38] sm:$0xff]
    %v600 = vld [vmem:[%s1 + $0x40] sm:$0xff]
    %v601 = vld [vmem:[%s1 + $0x48] sm:$0xff]
    %v602 = vld [vmem:[%s1 + $0x50] sm:$0xff]
    %v603 = vld [vmem:[%s1 + $0x58] sm:$0xff]
    %v604 = vld [vmem:[%s1 + $0x60] sm:$0xff]
    %v605 = vld [vmem:[%s1 + $0x68] sm:$0xff]
    %v606 = vld [vmem:[%s1 + $0x70] sm:$0xff]
    %v607 = vmul.f32 %v592, %v202
    %v608 = vmul.f32 %v593, %v207
    %v609 = vmul.f32 %v594, %v212
    %v610 = vmul.f32 %v595, %v217
    %v611 = vmul.f32 %v596, %v222
    %v612 = vmul.f32 %v597, %v202
    %v613 = vmul.f32 %v598, %v207
    %v614 = vmul.f32 %v599, %v212
    %v615 = vmul.f32 %v600, %v217
    %v616 = vmul.f32 %v601, %v222
    %v617 = vmul.f32 %v602, %v202
    %v618 = vmul.f32 %v603, %v207
    %v619 = vmul.f32 %v604, %v212
    %v620 = vmul.f32 %v605, %v217
    %v621 = vmul.f32 %v606, %v222
    %v622 = vmax.f32 %v607, %v609
    %v623 = vmax.f32 %v608, %v610
    %v624 = vmax.f32 %v622, %v611
    %v625 = vmax.f32 %v624, %v623
    %v626 = vrot.slane %v625, 4
    %v627 = vmax.f32 %v625, %v626
    %v628 = vrot.slane %v627, 2
    %v629 = vmax.f32 %v627, %v628
    %v630 = vrot.slane %v629, 1
    %v631 = vmax.f32 %v629, %v630
    %v632 = vmax.f32 %v612, %v614
    %v633 = vmax.f32 %v613, %v615
    %v634 = vmax.f32 %v632, %v616
    %v635 = vmax.f32 %v634, %v633
    %v636 = vrot.slane %v635, 4
    %v637 = vmax.f32 %v635, %v636
    %v638 = vrot.slane %v637, 2
    %v639 = vmax.f32 %v637, %v638
    %v640 = vrot.slane %v639, 1
    %v641 = vmax.f32 %v639, %v640
    %v642 = vmax.f32 %v617, %v619
    %v643 = vmax.f32 %v618, %v620
    %v644 = vmax.f32 %v642, %v621
    %v645 = vmax.f32 %v644, %v643
    %v646 = vrot.slane %v645, 4
    %v647 = vmax.f32 %v645, %v646
    %v648 = vrot.slane %v647, 2
    %v649 = vmax.f32 %v647, %v648
    %v650 = vrot.slane %v649, 1
    %v651 = vmax.f32 %v649, %v650
    %v652 = vsub.f32 %v607, %v631
    %v653 = vsub.f32 %v608, %v631
    %v654 = vsub.f32 %v609, %v631
    %v655 = vsub.f32 %v610, %v631
    %v656 = vsub.f32 %v611, %v631
    %v657 = vsub.f32 %v612, %v641
    %v658 = vsub.f32 %v613, %v641
    %v659 = vsub.f32 %v614, %v641
    %v660 = vsub.f32 %v615, %v641
    %v661 = vsub.f32 %v616, %v641
    %v662 = vsub.f32 %v617, %v651
    %v663 = vsub.f32 %v618, %v651
    %v664 = vsub.f32 %v619, %v651
    %v665 = vsub.f32 %v620, %v651
    %v666 = vsub.f32 %v621, %v651
    %v667 = vmul.f32 %v652, 1.442695
    %v668 = vpow.pop %v667
    %v669 = vmul.f32 %v653, 1.442695
    %v670 = vpow.pop %v669
    %v671 = vmul.f32 %v654, 1.442695
    %v672 = vpow.pop %v671
    %v673 = vmul.f32 %v655, 1.442695
    %v674 = vpow.pop %v673
    %v675 = vmul.f32 %v656, 1.442695
    %v676 = vpow.pop %v675
    %v677 = vmul.f32 %v657, 1.442695
    %v678 = vpow.pop %v677
    %v679 = vmul.f32 %v658, 1.442695
    %v680 = vpow.pop %v679
    %v681 = vmul.f32 %v659, 1.442695
    %v682 = vpow.pop %v681
    %v683 = vmul.f32 %v660, 1.442695
    %v684 = vpow.pop %v683
    %v685 = vmul.f32 %v661, 1.442695
    %v686 = vpow.pop %v685
    %v687 = vmul.f32 %v662, 1.442695
    %v688 = vpow.pop %v687
    %v689 = vmul.f32 %v663, 1.442695
    %v690 = vpow.pop %v689
    %v691 = vmul.f32 %v664, 1.442695
    %v692 = vpow.pop %v691
    %v693 = vmul.f32 %v665, 1.442695
    %v694 = vpow.pop %v693
    %v695 = vmul.f32 %v666, 1.442695
    %v696 = vpow.pop %v695
    %v697 = vadd.f32 %v668, %v670
    %v698 = vadd.f32 %v697, %v672
    %v699 = vadd.f32 %v698, %v674
    %v700 = vadd.f32 %v699, %v676
    %v701 = vrot.slane %v700, 4
    %v702 = vadd.f32 %v700, %v701
    %v703 = vrot.slane %v702, 2
    %v704 = vadd.f32 %v702, %v703
    %v705 = vrot.slane %v704, 1
    %v706 = vadd.f32 %v704, %v705
    %v707 = vadd.f32 %v678, %v680
    %v708 = vadd.f32 %v707, %v682
    %v709 = vadd.f32 %v708, %v684
    %v710 = vadd.f32 %v709, %v686
    %v711 = vrot.slane %v710, 4
    %v712 = vadd.f32 %v710, %v711
    %v713 = vrot.slane %v712, 2
    %v714 = vadd.f32 %v712, %v713
    %v715 = vrot.slane %v714, 1
    %v716 = vadd.f32 %v714, %v715
    %v717 = vadd.f32 %v688, %v690
    %v718 = vadd.f32 %v717, %v692
    %v719 = vadd.f32 %v718, %v694
    %v720 = vadd.f32 %v719, %v696
    %v721 = vrot.slane %v720, 4
    %v722 = vadd.f32 %v720, %v721
    %v723 = vrot.slane %v722, 2
    %v724 = vadd.f32 %v722, %v723
    %v725 = vrot.slane %v724, 1
    %v726 = vadd.f32 %v724, %v725
    %v727 = vrcp.pop %v706
    %v728 = vmul.f32 40.0, %v727
    %v729 = vrcp.pop %v716
    %v730 = vmul.f32 40.0, %v729
    %v731 = vrcp.pop %v726
    %v732 = vmul.f32 40.0, %v731
    %v733 = vmul.f32 %v668, %v728
    %v734 = vmul.f32 %v670, %v728
    %v735 = vmul.f32 %v672, %v728
    %v736 = vmul.f32 %v674, %v728
    %v737 = vmul.f32 %v676, %v728
    %v738 = vmul.f32 %v678, %v730
    %v739 = vmul.f32 %v680, %v730
    %v740 = vmul.f32 %v682, %v730
    %v741 = vmul.f32 %v684, %v730
    %v742 = vmul.f32 %v686, %v730
    %v743 = vmul.f32 %v688, %v732
    %v744 = vmul.f32 %v690, %v732
    %v745 = vmul.f32 %v692, %v732
    %v746 = vmul.f32 %v694, %v732
    %v747 = vmul.f32 %v696, %v732
    %v748 = vmul.f32 %v577, %v227
    %v749 = vmul.f32 %v578, %v232
    %v750 = vmul.f32 %v579, %v237
    %v751 = vmul.f32 %v580, %v242
    %v752 = vmul.f32 %v581, %v247
    %v753 = vmul.f32 %v582, %v227
    %v754 = vmul.f32 %v583, %v232
    %v755 = vmul.f32 %v584, %v237
    %v756 = vmul.f32 %v585, %v242
    %v757 = vmul.f32 %v586, %v247
    %v758 = vmul.f32 %v587, %v227
    %v759 = vmul.f32 %v588, %v232
    %v760 = vmul.f32 %v589, %v237
    %v761 = vmul.f32 %v590, %v242
    %v762 = vmul.f32 %v591, %v247
    %v763 = vmax.f32 %v748, %v750
    %v764 = vmax.f32 %v749, %v751
    %v765 = vmax.f32 %v763, %v752
    %v766 = vmax.f32 %v765, %v764
    %v767 = vrot.slane %v766, 4
    %v768 = vmax.f32 %v766, %v767
    %v769 = vrot.slane %v768, 2
    %v770 = vmax.f32 %v768, %v769
    %v771 = vrot.slane %v770, 1
    %v772 = vmax.f32 %v770, %v771
    %v773 = vmax.f32 %v753, %v755
    %v774 = vmax.f32 %v754, %v756
    %v775 = vmax.f32 %v773, %v757
    %v776 = vmax.f32 %v775, %v774
    %v777 = vrot.slane %v776, 4
    %v778 = vmax.f32 %v776, %v777
    %v779 = vrot.slane %v778, 2
    %v780 = vmax.f32 %v778, %v779
    %v781 = vrot.slane %v780, 1
    %v782 = vmax.f32 %v780, %v781
    %v783 = vmax.f32 %v758, %v760
    %v784 = vmax.f32 %v759, %v761
    %v785 = vmax.f32 %v783, %v762
    %v786 = vmax.f32 %v785, %v784
    %v787 = vrot.slane %v786, 4
    %v788 = vmax.f32 %v786, %v787
    %v789 = vrot.slane %v788, 2
    %v790 = vmax.f32 %v788, %v789
    %v791 = vrot.slane %v790, 1
    %v792 = vmax.f32 %v790, %v791
    %v793 = vsub.f32 %v748, %v772
    %v794 = vsub.f32 %v749, %v772
    %v795 = vsub.f32 %v750, %v772
    %v796 = vsub.f32 %v751, %v772
    %v797 = vsub.f32 %v752, %v772
    %v798 = vsub.f32 %v753, %v782
    %v799 = vsub.f32 %v754, %v782
    %v800 = vsub.f32 %v755, %v782
    %v801 = vsub.f32 %v756, %v782
    %v802 = vsub.f32 %v757, %v782
    %v803 = vsub.f32 %v758, %v792
    %v804 = vsub.f32 %v759, %v792
    %v805 = vsub.f32 %v760, %v792
    %v806 = vsub.f32 %v761, %v792
    %v807 = vsub.f32 %v762, %v792
    %v808 = vmul.f32 %v793, 1.442695
    %v809 = vpow.pop %v808
    %v810 = vmul.f32 %v794, 1.442695
    %v811 = vpow.pop %v810
    %v812 = vmul.f32 %v795, 1.442695
    %v813 = vpow.pop %v812
    %v814 = vmul.f32 %v796, 1.442695
    %v815 = vpow.pop %v814
    %v816 = vmul.f32 %v797, 1.442695
    %v817 = vpow.pop %v816
    %v818 = vmul.f32 %v798, 1.442695
    %v819 = vpow.pop %v818
    %v820 = vmul.f32 %v799, 1.442695
    %v821 = vpow.pop %v820
    %v822 = vmul.f32 %v800, 1.442695
    %v823 = vpow.pop %v822
    %v824 = vmul.f32 %v801, 1.442695
    %v825 = vpow.pop %v824
    %v826 = vmul.f32 %v802, 1.442695
    %v827 = vpow.pop %v826
    %v828 = vmul.f32 %v803, 1.442695
    %v829 = vpow.pop %v828
    %v830 = vmul.f32 %v804, 1.442695
    %v831 = vpow.pop %v830
    %v832 = vmul.f32 %v805, 1.442695
    %v833 = vpow.pop %v832
    %v834 = vmul.f32 %v806, 1.442695
    %v835 = vpow.pop %v834
    %v836 = vmul.f32 %v807, 1.442695
    %v837 = vpow.pop %v836
    %v838 = vadd.f32 %v809, %v811
    %v839 = vadd.f32 %v838, %v813
    %v840 = vadd.f32 %v839, %v815
    %v841 = vadd.f32 %v840, %v817
    %v842 = vrot.slane %v841, 4
    %v843 = vadd.f32 %v841, %v842
    %v844 = vrot.slane %v843, 2
    %v845 = vadd.f32 %v843, %v844
    %v846 = vrot.slane %v845, 1
    %v847 = vadd.f32 %v845, %v846
    %v848 = vadd.f32 %v819, %v821
    %v849 = vadd.f32 %v848, %v823
    %v850 = vadd.f32 %v849, %v825
    %v851 = vadd.f32 %v850, %v827
    %v852 = vrot.slane %v851, 4
    %v853 = vadd.f32 %v851, %v852
    %v854 = vrot.slane %v853, 2
    %v855 = vadd.f32 %v853, %v854
    %v856 = vrot.slane %v855, 1
    %v857 = vadd.f32 %v855, %v856
    %v858 = vadd.f32 %v829, %v831
    %v859 = vadd.f32 %v858, %v833
    %v860 = vadd.f32 %v859, %v835
    %v861 = vadd.f32 %v860, %v837
    %v862 = vrot.slane %v861, 4
    %v863 = vadd.f32 %v861, %v862
    %v864 = vrot.slane %v863, 2
    %v865 = vadd.f32 %v863, %v864
    %v866 = vrot.slane %v865, 1
    %v867 = vadd.f32 %v865, %v866
    %v868 = vrcp.pop %v847
    %v869 = vmul.f32 40.0, %v868
    %v870 = vrcp.pop %v857
    %v871 = vmul.f32 40.0, %v870
    %v872 = vrcp.pop %v867
    %v873 = vmul.f32 40.0, %v872
    %v874 = vmul.f32 %v809, %v869
    %v875 = vmul.f32 %v811, %v869
    %v876 = vmul.f32 %v813, %v869
    %v877 = vmul.f32 %v815, %v869
    %v878 = vmul.f32 %v817, %v869
    %v879 = vmul.f32 %v819, %v871
    %v880 = vmul.f32 %v821, %v871
    %v881 = vmul.f32 %v823, %v871
    %v882 = vmul.f32 %v825, %v871
    %v883 = vmul.f32 %v827, %v871
    %v884 = vmul.f32 %v829, %v873
    %v885 = vmul.f32 %v831, %v873
    %v886 = vmul.f32 %v833, %v873
    %v887 = vmul.f32 %v835, %v873
    %v888 = vmul.f32 %v837, %v873
    %v889 = vmul.f32 %v733, %v592
    %v890 = vmul.f32 %v734, %v593
    %v891 = vmul.f32 %v735, %v594
    %v892 = vmul.f32 %v736, %v595
    %v893 = vmul.f32 %v737, %v596
    %v894 = vmul.f32 %v738, %v597
    %v895 = vmul.f32 %v739, %v598
    %v896 = vmul.f32 %v740, %v599
    %v897 = vmul.f32 %v741, %v600
    %v898 = vmul.f32 %v742, %v601
    %v899 = vmul.f32 %v743, %v602
    %v900 = vmul.f32 %v744, %v603
    %v901 = vmul.f32 %v745, %v604
    %v902 = vmul.f32 %v746, %v605
    %v903 = vmul.f32 %v747, %v606
    %v904 = vmul.f32 %v874, %v577
    %v905 = vmul.f32 %v875, %v578
    %v906 = vmul.f32 %v876, %v579
    %v907 = vmul.f32 %v877, %v580
    %v908 = vmul.f32 %v878, %v581
    %v909 = vmul.f32 %v879, %v582
    %v910 = vmul.f32 %v880, %v583
    %v911 = vmul.f32 %v881, %v584
    %v912 = vmul.f32 %v882, %v585
    %v913 = vmul.f32 %v883, %v586
    %v914 = vmul.f32 %v884, %v587
    %v915 = vmul.f32 %v885, %v588
    %v916 = vmul.f32 %v886, %v589
    %v917 = vmul.f32 %v887, %v590
    %v918 = vmul.f32 %v888, %v591
    %v919 = vadd.f32 %v889, %v904
    %v920 = vadd.f32 %v890, %v905
    %v921 = vadd.f32 %v891, %v906
    %v922 = vadd.f32 %v892, %v907
    %v923 = vadd.f32 %v893, %v908
    %v924 = vadd.f32 %v894, %v909
    %v925 = vadd.f32 %v895, %v910
    %v926 = vadd.f32 %v896, %v911
    %v927 = vadd.f32 %v897, %v912
    %v928 = vadd.f32 %v898, %v913
    %v929 = vadd.f32 %v899, %v914
    %v930 = vadd.f32 %v900, %v915
    %v931 = vadd.f32 %v901, %v916
    %v932 = vadd.f32 %v902, %v917
    %v933 = vadd.f32 %v903, %v918
    %934 = vst [vmem:[#allocation2] sm:$0xff] %v919
    %935 = vst [vmem:[#allocation2 + $0x8] sm:$0xff] %v920
    %936 = vst [vmem:[#allocation2 + $0x10] sm:$0xff] %v921
    %937 = vst [vmem:[#allocation2 + $0x18] sm:$0xff] %v922
    %938 = vst [vmem:[#allocation2 + $0x20] sm:$0xff] %v923
    %939 = vst [vmem:[#allocation2 + $0x28] sm:$0xff] %v924
    %940 = vst [vmem:[#allocation2 + $0x30] sm:$0xff] %v925
    %941 = vst [vmem:[#allocation2 + $0x38] sm:$0xff] %v926
    %942 = vst [vmem:[#allocation2 + $0x40] sm:$0xff] %v927
    %943 = vst [vmem:[#allocation2 + $0x48] sm:$0xff] %v928
    %944 = vst [vmem:[#allocation2 + $0x50] sm:$0xff] %v929
    %945 = vst [vmem:[#allocation2 + $0x58] sm:$0xff] %v930
    %946 = vst [vmem:[#allocation2 + $0x60] sm:$0xff] %v931
    %947 = vst [vmem:[#allocation2 + $0x68] sm:$0xff] %v932
    %948 = vst [vmem:[#allocation2 + $0x70] sm:$0xff] %v933
    // Predicated region
    $region30: #{tpu_custom_call.1} parent=1 // pred_check
      _
    $region31: #{tpu_custom_call.1} parent=1 // pred_check_branch
      %950 = sbr.rel (0) target = $region33
    $region32: #{tpu_custom_call.1} parent=1 // pred_region
      %s952 = ssub.s32 1920, 1920
      %953 = vsyncadd [#allocation3], %s952
      %s954 = sshll.u32 [#allocation2], 4
      %s955 = int_to_ptr.vmem [resolvable:$true] %s954
      %960 = dma.vmem_to_hbm [thread:$0]  %s955, 1920, %s7, [#allocation3], 128, 128, 8
    $region33: #{tpu_custom_call.1} parent=1 // pred_fallthru
      _
    // Predicated region
    $region34: #{tpu_custom_call.1} parent=1 // pred_check
      _
    $region35: #{tpu_custom_call.1} parent=1 // pred_check_branch
      %962 = sbr.rel (0) target = $region37
    $region36: #{tpu_custom_call.1} parent=1 // pred_region
      %963 = dma.done [#allocation3], 1920
    $region37: #{tpu_custom_call.1} parent=1 // pred_fallthru
      _
    %964 = vsyncpa [#allocation3], 1

</llo_original>
